<compile_context>
chip_gen: v7x
topology: tpu7x:2x2x1
jax: 0.10.0
libtpu: 0.0.40
codegen_flags: <defaults>
</compile_context>

<pallas_src>
import functools
import math

import jax
import jax.numpy as jnp
from jax import lax
from jax.experimental import pallas as pl
from jax.experimental.pallas import tpu as pltpu

_LANES = 128
_MAX_BLOCK_BYTES = 2 * 1024 * 1024   # cap on a single logits DMA block
_CHUNK_ROWS = 512                    # in-kernel compute chunk (bounds VMEM temporaries)
_ACC_ROWS = 64                       # rows of the small resident accumulator


def _round_up(x, m):
    return ((x + m - 1) // m) * m


def _device_kind():
    try:
        return jax.devices()[0].device_kind.lower()
    except Exception:
        return ""


def _default_tile_rows(kind):
    # v6e: 4096-row (2 MiB) logits blocks to amortize per-step overhead;
    # v5e (16 MiB scoped-VMEM default) and v7x (64 MiB total VMEM) keep 2048 rows.
    return 4096 if "v6" in kind else 2048


def _default_splits(kind):
    # Only v7x (2 TensorCores/chip among the targeted generations) benefits from a
    # 2-way parallel split; on single-core v5e/v6e it only adds a masked duplicate tile.
    return 2 if "v7" in kind else 1


def _focal_loss_kernel(expand_ref, cls_ref, x_ref, t_ref, out_ref, acc_ref, *,
                       gamma, alpha, block_rows, chunk_rows, acc_rows,
                       lane_w, groups, valid_rows, tiles_per_split, gamma_int):
    c = pl.program_id(0)          # parallel split (maps to the 2 TCs on v7x)
    j = pl.program_id(1)          # reduction over row tiles
    nj = pl.num_programs(1)

    @pl.when(j == 0)
    def _init():
        acc_ref[...] = jnp.zeros_like(acc_ref)

    cls = cls_ref[...]                                   # (1, lane_w) f32, 1-indexed class/lane
    if groups > 1:
        expand = expand_ref[...].astype(jnp.bfloat16)    # (groups, lane_w) one-hot (exact in bf16)

    n_chunks = block_rows // chunk_rows

    def chunk_loss(i):
        r0 = pl.multiple_of(i * chunk_rows, chunk_rows)
        x = x_ref[pl.ds(r0, chunk_rows), :].astype(jnp.float32)
        if groups == 1:
            t_lane = jnp.broadcast_to(
                t_ref[pl.ds(r0, chunk_rows), :].astype(jnp.float32),
                (chunk_rows, lane_w))
        else:
            # One-hot expansion of per-anchor targets to per-lane targets on the MXU.
            # Targets are small integers (|t| <= C+1 <= 128), so bf16 is exact.
            t_lane = jnp.dot(
                t_ref[pl.ds(r0, chunk_rows), :].astype(jnp.bfloat16), expand,
                preferred_element_type=jnp.float32)

        # Stable log-space pieces (2 EUP transcendentals):
        #   sp_pos = softplus(x)  = -log(1-p),   sp_neg = softplus(-x) = -log(p)
        e = jnp.exp(-jnp.abs(x))
        sp_pos = jnp.maximum(x, 0.0) + jnp.log1p(e)
        sp_neg = sp_pos - x

        if gamma_int is not None:
            if gamma_int == 0:
                term1 = -sp_neg
                term2 = -sp_pos
            else:
                # gamma=2 (default) specialization: p and 1-p from e with one cheap
                # approx reciprocal + Newton step; powers are VPU multiplies.
                d = 1.0 + e
                r = pl.reciprocal(d, approx=True)
                r = r * (2.0 - d * r)                    # Newton step -> f32-accurate
                q = jnp.where(x > 0.0, e, 1.0) * r       # q = 1 - p = sigmoid(-x)
                p = 1.0 - q
                qg, pg = q, p
                for _ in range(gamma_int - 1):
                    qg = qg * q
                    pg = pg * p
                term1 = -qg * sp_neg                     # (1-p)^g * log(p)
                term2 = -pg * sp_pos                     # p^g     * log(1-p)
        else:
            term1 = -jnp.exp(-gamma * sp_pos) * sp_neg
            term2 = -jnp.exp(-gamma * sp_neg) * sp_pos

        # Premultiplied class-mask weights (select instead of cmp->cast->mul->mul).
        w_pos = jnp.where(t_lane == cls, -alpha, 0.0)
        w_neg = jnp.where(jnp.logical_and(t_lane != cls, t_lane >= 0.0), alpha - 1.0, 0.0)
        return w_pos * term1 + w_neg * term2

    def accumulate(l):
        # Tree-sum the chunk into the tiny resident accumulator (pure VPU adds,
        # no big-accumulator load/store per loss vreg).
        acc_ref[...] += l.reshape(chunk_rows // acc_rows, acc_rows, lane_w).sum(axis=0)

    tile_idx = c * tiles_per_split + j
    needs_mask = (tile_idx + 1) * block_rows > valid_rows

    @pl.when(jnp.logical_not(needs_mask))
    def _fast():                                         # hot path: no row masking
        def body(i, carry):
            accumulate(chunk_loss(i))
            return carry
        lax.fori_loop(0, n_chunks, body, 0)

    @pl.when(needs_mask)
    def _masked():                                       # tail / clamped duplicate tiles
        def body(i, carry):
            l = chunk_loss(i)
            row = (lax.broadcasted_iota(jnp.int32, (chunk_rows, lane_w), 0)
                   + tile_idx * block_rows + i * chunk_rows)
            accumulate(jnp.where(row < valid_rows, l, 0.0))
            return carry
        lax.fori_loop(0, n_chunks, body, 0)

    @pl.when(j == nj - 1)
    def _flush():
        out_ref[...] = acc_ref[...]


def sigmoid_focal_loss_sum(logits, targets, gamma, alpha, *,
                           tile_rows=None, n_splits=None):
    """Pallas TPU equivalent of SigmoidFocalLoss(gamma, alpha)(logits, targets)."""
    N, C = logits.shape
    targets = targets.astype(jnp.int32)

    kind = _device_kind()
    if tile_rows is None:
        tile_rows = _default_tile_rows(kind)
    if n_splits is None:
        n_splits = _default_splits(kind)

    # Lane-dense packing: `groups` anchors per 128-lane row when C divides 128.
    if C <= _LANES and _LANES % C == 0:
        groups = _LANES // C          # bf16 one-hot matmul exact: C <= 64, |t| <= 128
        lane_w = _LANES
    else:
        groups = 1
        lane_w = C

    # Pad anchors (zero-loss rows: target = -2, logits = 0) so the flat view has a
    # whole number of anchors per row and at least 8 rows.  No-op when aligned.
    n_pad = max(_round_up(N, groups), 8 * groups)
    if n_pad != N:
        logits = jnp.pad(logits, ((0, n_pad - N), (0, 0)))
        targets = jnp.pad(targets, (0, n_pad - N), constant_values=-2)

    rows = n_pad // groups
    x_flat = logits.reshape(rows, lane_w)        # free: contiguous row-major reshape
    t_flat = targets.reshape(rows, groups)

    # DMA block sizing: large blocks amortize per-grid-step overhead; the in-kernel
    # chunk loop keeps compute temporaries ~chunk-sized regardless of block size.
    max_rows_by_vmem = max(8, (_MAX_BLOCK_BYTES // (lane_w * 4)) // 8 * 8)
    block_rows = _round_up(min(tile_rows, max_rows_by_vmem, _round_up(rows, 8)), 8)
    chunk_rows = min(_CHUNK_ROWS, block_rows)
    block_rows = _round_up(block_rows, chunk_rows)       # whole number of chunks / block
    acc_rows = math.gcd(chunk_rows, _ACC_ROWS)           # divides chunk_rows, multiple of 8

    num_tiles = pl.cdiv(rows, block_rows)
    splits = max(1, min(n_splits, num_tiles))
    tiles_per_split = pl.cdiv(num_tiles, splits)

    # Tiny per-lane constants (stay resident in VMEM across the whole grid).
    lane = jnp.arange(lane_w, dtype=jnp.int32)
    cls_row = ((lane % C) + 1).astype(jnp.float32).reshape(1, lane_w)
    grp = jnp.arange(groups, dtype=jnp.int32)
    expand = (lane[None, :] // C == grp[:, None]).astype(jnp.float32)   # (groups, lane_w)

    gamma = float(gamma)
    gamma_int = int(gamma) if (gamma.is_integer() and 0.0 <= gamma <= 8.0) else None

    def data_idx(c, j):
        # Clamp so the DMA never starts fully out of bounds; clamped duplicate tiles
        # are zeroed by the in-kernel row mask.
        return (jnp.minimum(c * tiles_per_split + j, num_tiles - 1), 0)

    kernel = functools.partial(
        _focal_loss_kernel,
        gamma=gamma, alpha=float(alpha),
        block_rows=block_rows, chunk_rows=chunk_rows, acc_rows=acc_rows,
        lane_w=lane_w, groups=groups, valid_rows=rows,
        tiles_per_split=tiles_per_split, gamma_int=gamma_int)

    elems = rows * lane_w
    n_eup = 3 if gamma_int is not None else 4
    cost = pl.CostEstimate(
        flops=int(22 * elems + 2 * rows * groups * lane_w),
        transcendentals=int(n_eup * elems),
        bytes_accessed=int(x_flat.size * x_flat.dtype.itemsize + 4 * t_flat.size
                           + 4 * splits * acc_rows * lane_w),
    )

    partial_sums = pl.pallas_call(
        kernel,
        out_shape=jax.ShapeDtypeStruct((splits * acc_rows, lane_w), jnp.float32),
        grid_spec=pltpu.PrefetchScalarGridSpec(
            num_scalar_prefetch=0,
            grid=(splits, tiles_per_split),
            in_specs=[
                pl.BlockSpec((groups, lane_w), lambda c, j: (0, 0)),   # one-hot expansion
                pl.BlockSpec((1, lane_w), lambda c, j: (0, 0)),        # class id per lane
                pl.BlockSpec((block_rows, lane_w), data_idx),          # logits tile
                pl.BlockSpec((block_rows, groups), data_idx),          # targets tile
            ],
            out_specs=pl.BlockSpec((acc_rows, lane_w), lambda c, j: (c, 0)),
            scratch_shapes=[pltpu.VMEM((acc_rows, lane_w), jnp.float32)],
        ),
        compiler_params=pltpu.CompilerParams(
            dimension_semantics=("parallel", "arbitrary"),
        ),
        cost_estimate=cost,
    )(expand, cls_row, x_flat, t_flat)

    # Tiny epilogue reduction of the per-split accumulator slab (done by XLA).
    return jnp.sum(partial_sums)


def _reference(logits, targets, gamma, alpha):
    """Pure-JAX mirror of sigmoid_focal_loss_cpu + .sum()."""
    C = logits.shape[1]
    class_range = jnp.arange(1, C + 1, dtype=jnp.int32)[None, :]
    t = targets.astype(jnp.int32)[:, None]
    p = jax.nn.sigmoid(logits.astype(jnp.float32))
    term1 = (1.0 - p) ** gamma * jnp.log(p)
    term2 = p ** gamma * jnp.log(1.0 - p)
    loss = (-(t == class_range).astype(jnp.float32) * term1 * alpha
            - ((t != class_range) & (t >= 0)).astype(jnp.float32) * term2 * (1.0 - alpha))
    return jnp.sum(loss)


if __name__ == "__main__":
    alpha = 0.25
    key = jax.random.PRNGKey(0)

    # (N, C, tile_rows, n_splits, gamma) — small shapes exercising:
    #   1) lane-dense path, single tile, chip-default tile/split selection
    #   2) anchor padding + partial tail tile + 2-way split + clamped duplicate tile
    #   3) generic path (C does not divide 128), multi-tile with masked tail
    #   4) non-integer gamma (exp-based log-space path)
    configs = [
        (64,   16, None, None, 2.0),
        (1003, 16, 48,   2,    2.0),
        (37,   10, 16,   1,    2.0),
        (200,  16, 64,   1,    1.5),
    ]
    for idx, (N, C, tile_rows, n_splits, gamma) in enumerate(configs):
        k1, k2 = jax.random.split(jax.random.fold_in(key, idx))
        logits = jax.random.normal(k1, (N, C), dtype=jnp.float32)
        # labels in [-1, C]: -1 = ignore, 0 = background, 1..C = classes (1-indexed)
        targets = jax.random.randint(k2, (N,), -1, C + 1, dtype=jnp.int32)

        got = sigmoid_focal_loss_sum(logits, targets, gamma, alpha,
                                     tile_rows=tile_rows, n_splits=n_splits)
        jax.block_until_ready(got)

        want = _reference(logits, targets, gamma, alpha)
        assert jnp.allclose(got, want, rtol=2e-4, atol=1e-3), (idx, got, want)

    print("KERNEL_OK")
</pallas_src>

<mosaic_0001>
module attributes {stable_mosaic.version = 11 : i64} {
  func.func @_focal_loss_kernel(%arg0: i32, %arg1: i32, %arg2: memref<8x128xf32, #tpu.memory_space<vmem>>, %arg3: memref<1x128xf32, #tpu.memory_space<vmem>>, %arg4: memref<8x128xf32, #tpu.memory_space<vmem>>, %arg5: memref<8x8xi32, #tpu.memory_space<vmem>>, %arg6: memref<8x128xf32, #tpu.memory_space<vmem>>, %arg7: memref<8x128xf32, #tpu.memory_space<vmem>>) attributes {dimension_semantics = [#tpu.dimension_semantics<parallel>, #tpu.dimension_semantics<arbitrary>], iteration_bounds = array<i64: 1, 1>, scalar_prefetch = 0 : i64, scratch_operands = 1 : i64, tpu.core_type = #tpu.core_type<tc>, window_params = [{pipeline_mode = #tpu.pipeline_mode<synchronous>, transform_indices = @transform_0, window_bounds = array<i64: 8, 128>}, {pipeline_mode = #tpu.pipeline_mode<synchronous>, transform_indices = @transform_1, window_bounds = array<i64: 1, 128>}, {transform_indices = @transform_2, window_bounds = array<i64: 8, 128>}, {transform_indices = @transform_3, window_bounds = array<i64: 8, 8>}, {transform_indices = @transform_4, window_bounds = array<i64: 8, 128>}]} {
    %c0_i32 = arith.constant 0 : i32
    %0 = arith.cmpi eq, %arg1, %c0_i32 : i32
    %1 = arith.extui %0 : i1 to i32
    %c0_i32_0 = arith.constant 0 : i32
    %2 = arith.cmpi ne, %1, %c0_i32_0 : i32
    scf.if %2 {
      %cst = arith.constant 0.000000e+00 : f32
      %19 = vector.broadcast %cst : f32 to vector<8x128xf32>
      %c0_10 = arith.constant 0 : index
      %c0_11 = arith.constant 0 : index
      %20 = vector.load %arg7[%c0_10, %c0_11] : memref<8x128xf32, #tpu.memory_space<vmem>>, vector<8x128xf32>
      tpu.vector_store %arg7[%c0_10, %c0_11], %19 {strides = array<i32>} : memref<8x128xf32, #tpu.memory_space<vmem>>, vector<8x128xf32>,
    } else {
    }
    %c0 = arith.constant 0 : index
    %c0_1 = arith.constant 0 : index
    %3 = vector.load %arg3[%c0, %c0_1] : memref<1x128xf32, #tpu.memory_space<vmem>>, vector<1x128xf32>
    %c0_2 = arith.constant 0 : index
    %c0_3 = arith.constant 0 : index
    %4 = vector.load %arg2[%c0_2, %c0_3] : memref<8x128xf32, #tpu.memory_space<vmem>>, vector<8x128xf32>
    %5 = arith.truncf %4 : vector<8x128xf32> to vector<8x128xbf16>
    %c1_i32 = arith.constant 1 : i32
    %6 = arith.muli %arg0, %c1_i32 : i32
    %7 = arith.addi %6, %arg1 : i32
    %c1_i32_4 = arith.constant 1 : i32
    %8 = arith.addi %7, %c1_i32_4 : i32
    %c8_i32 = arith.constant 8 : i32
    %9 = arith.muli %8, %c8_i32 : i32
    %c8_i32_5 = arith.constant 8 : i32
    %10 = arith.cmpi sgt, %9, %c8_i32_5 : i32
    %true = arith.constant true
    %11 = arith.xori %10, %true : i1
    %12 = arith.extui %11 : i1 to i32
    %c0_i32_6 = arith.constant 0 : i32
    %13 = arith.cmpi ne, %12, %c0_i32_6 : i32
    scf.if %13 {
      %c0_i32_10 = arith.constant 0 : i32
      %c8_i32_11 = arith.constant 8 : i32
      %19 = arith.muli %c0_i32_10, %c8_i32_11 : i32
      %20 = tpu.assume_multiple %19, 8 : i32
      %21 = arith.index_cast %20 : i32 to index
      %c0_12 = arith.constant 0 : index
      %22 = vector.load %arg4[%21, %c0_12] : memref<8x128xf32, #tpu.memory_space<vmem>>, vector<8x128xf32>
      %23 = arith.index_cast %20 : i32 to index
      %c0_13 = arith.constant 0 : index
      %24 = vector.load %arg5[%23, %c0_13] : memref<8x8xi32, #tpu.memory_space<vmem>>, vector<8x8xi32>
      %25 = arith.sitofp %24 : vector<8x8xi32> to vector<8x8xbf16>
      %cst = arith.constant dense<0.000000e+00> : vector<8x128xf32>
      %26 = tpu.matmul %25, %5, %cst {dimension_numbers = #tpu.dot_dimension_numbers<[1], [0], [0], [1], [0, 0, 1, 1], [], []>} : vector<8x8xbf16>, vector<8x128xbf16>, vector<8x128xf32> -> vector<8x128xf32>
      %27 = math.absf %22 : vector<8x128xf32>
      %cst_14 = arith.constant 0.000000e+00 : f32
      %28 = vector.broadcast %cst_14 : f32 to vector<8x128xf32>
      %29 = arith.subf %28, %27 : vector<8x128xf32>
      %30 = math.exp %29 : vector<8x128xf32>
      %cst_15 = arith.constant 0.000000e+00 : f32
      %31 = vector.broadcast %cst_15 : f32 to vector<8x128xf32>
      %32 = arith.maximumf %22, %31 : vector<8x128xf32>
      %33 = math.log1p %30 : vector<8x128xf32>
      %34 = arith.addf %32, %33 : vector<8x128xf32>
      %35 = arith.subf %34, %22 : vector<8x128xf32>
      %cst_16 = arith.constant 1.000000e+00 : f32
      %36 = vector.broadcast %cst_16 : f32 to vector<8x128xf32>
      %37 = arith.addf %36, %30 : vector<8x128xf32>
      %38 = tpu.reciprocal %37 {approx = true} : vector<8x128xf32> -> vector<8x128xf32>
      %39 = arith.mulf %37, %38 : vector<8x128xf32>
      %cst_17 = arith.constant 2.000000e+00 : f32
      %40 = vector.broadcast %cst_17 : f32 to vector<8x128xf32>
      %41 = arith.subf %40, %39 : vector<8x128xf32>
      %42 = arith.mulf %38, %41 : vector<8x128xf32>
      %cst_18 = arith.constant 0.000000e+00 : f32
      %43 = vector.broadcast %cst_18 : f32 to vector<8x128xf32>
      %44 = arith.cmpf ogt, %22, %43 : vector<8x128xf32>
      %cst_19 = arith.constant 1.000000e+00 : f32
      %45 = vector.broadcast %cst_19 : f32 to vector<8x128xf32>
      %46 = arith.select %44, %30, %45 : vector<8x128xi1>, vector<8x128xf32>
      %47 = arith.mulf %46, %42 : vector<8x128xf32>
      %cst_20 = arith.constant 1.000000e+00 : f32
      %48 = vector.broadcast %cst_20 : f32 to vector<8x128xf32>
      %49 = arith.subf %48, %47 : vector<8x128xf32>
      %50 = arith.mulf %47, %47 : vector<8x128xf32>
      %51 = arith.mulf %49, %49 : vector<8x128xf32>
      %cst_21 = arith.constant 0.000000e+00 : f32
      %52 = vector.broadcast %cst_21 : f32 to vector<8x128xf32>
      %53 = arith.subf %52, %50 : vector<8x128xf32>
      %54 = arith.mulf %53, %35 : vector<8x128xf32>
      %cst_22 = arith.constant 0.000000e+00 : f32
      %55 = vector.broadcast %cst_22 : f32 to vector<8x128xf32>
      %56 = arith.subf %55, %51 : vector<8x128xf32>
      %57 = arith.mulf %56, %34 : vector<8x128xf32>
      %58 = vector.broadcast %3 : vector<1x128xf32> to vector<8x128xf32>
      %59 = arith.cmpf oeq, %26, %58 : vector<8x128xf32>
      %cst_23 = arith.constant -2.500000e-01 : f32
      %cst_24 = arith.constant 0.000000e+00 : f32
      %60 = vector.broadcast %cst_23 : f32 to vector<8x128xf32>
      %61 = vector.broadcast %cst_24 : f32 to vector<8x128xf32>
      %62 = arith.select %59, %60, %61 : vector<8x128xi1>, vector<8x128xf32>
      %63 = vector.broadcast %3 : vector<1x128xf32> to vector<8x128xf32>
      %64 = arith.cmpf one, %26, %63 : vector<8x128xf32>
      %cst_25 = arith.constant 0.000000e+00 : f32
      %65 = vector.broadcast %cst_25 : f32 to vector<8x128xf32>
      %66 = arith.cmpf oge, %26, %65 : vector<8x128xf32>
      %67 = arith.andi %64, %66 : vector<8x128xi1>
      %cst_26 = arith.constant -7.500000e-01 : f32
      %cst_27 = arith.constant 0.000000e+00 : f32
      %68 = vector.broadcast %cst_26 : f32 to vector<8x128xf32>
      %69 = vector.broadcast %cst_27 : f32 to vector<8x128xf32>
      %70 = arith.select %67, %68, %69 : vector<8x128xi1>, vector<8x128xf32>
      %71 = arith.mulf %62, %54 : vector<8x128xf32>
      %72 = arith.mulf %70, %57 : vector<8x128xf32>
      %73 = arith.addf %71, %72 : vector<8x128xf32>
      %c0_28 = arith.constant 0 : index
      %c0_29 = arith.constant 0 : index
      %74 = vector.load %arg7[%c0_28, %c0_29] : memref<8x128xf32, #tpu.memory_space<vmem>>, vector<8x128xf32>
      %75 = vector.shape_cast %73 : vector<8x128xf32> to vector<1x8x128xf32>
      %cst_30 = arith.constant dense<0.000000e+00> : vector<8x128xf32>
      %76 = vector.multi_reduction <add>, %75, %cst_30 [0] : vector<1x8x128xf32> to vector<8x128xf32>
      %77 = arith.addf %74, %76 : vector<8x128xf32>
      %c0_31 = arith.constant 0 : index
      %c0_32 = arith.constant 0 : index
      %78 = vector.load %arg7[%c0_31, %c0_32] : memref<8x128xf32, #tpu.memory_space<vmem>>, vector<8x128xf32>
      tpu.vector_store %arg7[%c0_31, %c0_32], %77 {strides = array<i32>} : memref<8x128xf32, #tpu.memory_space<vmem>>, vector<8x128xf32>,
      %c1_i32_33 = arith.constant 1 : i32
    } else {
    }
    %14 = arith.extui %10 : i1 to i32
    %c0_i32_7 = arith.constant 0 : i32
    %15 = arith.cmpi ne, %14, %c0_i32_7 : i32
    scf.if %15 {
      %c0_i32_10 = arith.constant 0 : i32
      %c8_i32_11 = arith.constant 8 : i32
      %19 = arith.muli %c0_i32_10, %c8_i32_11 : i32
      %20 = tpu.assume_multiple %19, 8 : i32
      %21 = arith.index_cast %20 : i32 to index
      %c0_12 = arith.constant 0 : index
      %22 = vector.load %arg4[%21, %c0_12] : memref<8x128xf32, #tpu.memory_space<vmem>>, vector<8x128xf32>
      %23 = arith.index_cast %20 : i32 to index
      %c0_13 = arith.constant 0 : index
      %24 = vector.load %arg5[%23, %c0_13] : memref<8x8xi32, #tpu.memory_space<vmem>>, vector<8x8xi32>
      %25 = arith.sitofp %24 : vector<8x8xi32> to vector<8x8xbf16>
      %cst = arith.constant dense<0.000000e+00> : vector<8x128xf32>
      %26 = tpu.matmul %25, %5, %cst {dimension_numbers = #tpu.dot_dimension_numbers<[1], [0], [0], [1], [0, 0, 1, 1], [], []>} : vector<8x8xbf16>, vector<8x128xbf16>, vector<8x128xf32> -> vector<8x128xf32>
      %27 = math.absf %22 : vector<8x128xf32>
      %cst_14 = arith.constant 0.000000e+00 : f32
      %28 = vector.broadcast %cst_14 : f32 to vector<8x128xf32>
      %29 = arith.subf %28, %27 : vector<8x128xf32>
      %30 = math.exp %29 : vector<8x128xf32>
      %cst_15 = arith.constant 0.000000e+00 : f32
      %31 = vector.broadcast %cst_15 : f32 to vector<8x128xf32>
      %32 = arith.maximumf %22, %31 : vector<8x128xf32>
      %33 = math.log1p %30 : vector<8x128xf32>
      %34 = arith.addf %32, %33 : vector<8x128xf32>
      %35 = arith.subf %34, %22 : vector<8x128xf32>
      %cst_16 = arith.constant 1.000000e+00 : f32
      %36 = vector.broadcast %cst_16 : f32 to vector<8x128xf32>
      %37 = arith.addf %36, %30 : vector<8x128xf32>
      %38 = tpu.reciprocal %37 {approx = true} : vector<8x128xf32> -> vector<8x128xf32>
      %39 = arith.mulf %37, %38 : vector<8x128xf32>
      %cst_17 = arith.constant 2.000000e+00 : f32
      %40 = vector.broadcast %cst_17 : f32 to vector<8x128xf32>
      %41 = arith.subf %40, %39 : vector<8x128xf32>
      %42 = arith.mulf %38, %41 : vector<8x128xf32>
      %cst_18 = arith.constant 0.000000e+00 : f32
      %43 = vector.broadcast %cst_18 : f32 to vector<8x128xf32>
      %44 = arith.cmpf ogt, %22, %43 : vector<8x128xf32>
      %cst_19 = arith.constant 1.000000e+00 : f32
      %45 = vector.broadcast %cst_19 : f32 to vector<8x128xf32>
      %46 = arith.select %44, %30, %45 : vector<8x128xi1>, vector<8x128xf32>
      %47 = arith.mulf %46, %42 : vector<8x128xf32>
      %cst_20 = arith.constant 1.000000e+00 : f32
      %48 = vector.broadcast %cst_20 : f32 to vector<8x128xf32>
      %49 = arith.subf %48, %47 : vector<8x128xf32>
      %50 = arith.mulf %47, %47 : vector<8x128xf32>
      %51 = arith.mulf %49, %49 : vector<8x128xf32>
      %cst_21 = arith.constant 0.000000e+00 : f32
      %52 = vector.broadcast %cst_21 : f32 to vector<8x128xf32>
      %53 = arith.subf %52, %50 : vector<8x128xf32>
      %54 = arith.mulf %53, %35 : vector<8x128xf32>
      %cst_22 = arith.constant 0.000000e+00 : f32
      %55 = vector.broadcast %cst_22 : f32 to vector<8x128xf32>
      %56 = arith.subf %55, %51 : vector<8x128xf32>
      %57 = arith.mulf %56, %34 : vector<8x128xf32>
      %58 = vector.broadcast %3 : vector<1x128xf32> to vector<8x128xf32>
      %59 = arith.cmpf oeq, %26, %58 : vector<8x128xf32>
      %cst_23 = arith.constant -2.500000e-01 : f32
      %cst_24 = arith.constant 0.000000e+00 : f32
      %60 = vector.broadcast %cst_23 : f32 to vector<8x128xf32>
      %61 = vector.broadcast %cst_24 : f32 to vector<8x128xf32>
      %62 = arith.select %59, %60, %61 : vector<8x128xi1>, vector<8x128xf32>
      %63 = vector.broadcast %3 : vector<1x128xf32> to vector<8x128xf32>
      %64 = arith.cmpf one, %26, %63 : vector<8x128xf32>
      %cst_25 = arith.constant 0.000000e+00 : f32
      %65 = vector.broadcast %cst_25 : f32 to vector<8x128xf32>
      %66 = arith.cmpf oge, %26, %65 : vector<8x128xf32>
      %67 = arith.andi %64, %66 : vector<8x128xi1>
      %cst_26 = arith.constant -7.500000e-01 : f32
      %cst_27 = arith.constant 0.000000e+00 : f32
      %68 = vector.broadcast %cst_26 : f32 to vector<8x128xf32>
      %69 = vector.broadcast %cst_27 : f32 to vector<8x128xf32>
      %70 = arith.select %67, %68, %69 : vector<8x128xi1>, vector<8x128xf32>
      %71 = arith.mulf %62, %54 : vector<8x128xf32>
      %72 = arith.mulf %70, %57 : vector<8x128xf32>
      %73 = arith.addf %71, %72 : vector<8x128xf32>
      %74 = tpu.iota {dimensions = array<i32: 0>} : vector<8x128xi32>
      %c8_i32_28 = arith.constant 8 : i32
      %75 = arith.muli %7, %c8_i32_28 : i32
      %76 = vector.broadcast %75 : i32 to vector<8x128xi32>
      %77 = arith.addi %74, %76 : vector<8x128xi32>
      %c8_i32_29 = arith.constant 8 : i32
      %78 = arith.muli %c0_i32_10, %c8_i32_29 : i32
      %79 = vector.broadcast %78 : i32 to vector<8x128xi32>
      %80 = arith.addi %77, %79 : vector<8x128xi32>
      %c8_i32_30 = arith.constant 8 : i32
      %81 = vector.broadcast %c8_i32_30 : i32 to vector<8x128xi32>
      %82 = arith.cmpi slt, %80, %81 : vector<8x128xi32>
      %cst_31 = arith.constant 0.000000e+00 : f32
      %83 = vector.broadcast %cst_31 : f32 to vector<8x128xf32>
      %84 = arith.select %82, %73, %83 : vector<8x128xi1>, vector<8x128xf32>
      %c0_32 = arith.constant 0 : index
      %c0_33 = arith.constant 0 : index
      %85 = vector.load %arg7[%c0_32, %c0_33] : memref<8x128xf32, #tpu.memory_space<vmem>>, vector<8x128xf32>
      %86 = vector.shape_cast %84 : vector<8x128xf32> to vector<1x8x128xf32>
      %cst_34 = arith.constant dense<0.000000e+00> : vector<8x128xf32>
      %87 = vector.multi_reduction <add>, %86, %cst_34 [0] : vector<1x8x128xf32> to vector<8x128xf32>
      %88 = arith.addf %85, %87 : vector<8x128xf32>
      %c0_35 = arith.constant 0 : index
      %c0_36 = arith.constant 0 : index
      %89 = vector.load %arg7[%c0_35, %c0_36] : memref<8x128xf32, #tpu.memory_space<vmem>>, vector<8x128xf32>
      tpu.vector_store %arg7[%c0_35, %c0_36], %88 {strides = array<i32>} : memref<8x128xf32, #tpu.memory_space<vmem>>, vector<8x128xf32>,
      %c1_i32_37 = arith.constant 1 : i32
    } else {
    }
    %c0_i32_8 = arith.constant 0 : i32
    %16 = arith.cmpi eq, %arg1, %c0_i32_8 : i32
    %17 = arith.extui %16 : i1 to i32
    %c0_i32_9 = arith.constant 0 : i32
    %18 = arith.cmpi ne, %17, %c0_i32_9 : i32
    scf.if %18 {
      %c0_10 = arith.constant 0 : index
      %c0_11 = arith.constant 0 : index
      %19 = vector.load %arg7[%c0_10, %c0_11] : memref<8x128xf32, #tpu.memory_space<vmem>>, vector<8x128xf32>
      %c0_12 = arith.constant 0 : index
      %c0_13 = arith.constant 0 : index
      %20 = vector.load %arg6[%c0_12, %c0_13] : memref<8x128xf32, #tpu.memory_space<vmem>>, vector<8x128xf32>
      tpu.vector_store %arg6[%c0_12, %c0_13], %19 {strides = array<i32>} : memref<8x128xf32, #tpu.memory_space<vmem>>, vector<8x128xf32>,
    } else {
    }
    return
  }
  func.func @transform_0(%arg0: i32, %arg1: i32) -> (i32, i32) {
    %c0_i32 = arith.constant 0 : i32
    %c0_i32_0 = arith.constant 0 : i32
    %c0_i32_1 = arith.constant 0 : i32
    return %c0_i32, %c0_i32_0 : i32, i32
  }
  func.func @transform_1(%arg0: i32, %arg1: i32) -> (i32, i32) {
    %c0_i32 = arith.constant 0 : i32
    %c0_i32_0 = arith.constant 0 : i32
    %c0_i32_1 = arith.constant 0 : i32
    return %c0_i32, %c0_i32_0 : i32, i32
  }
  func.func @transform_2(%arg0: i32, %arg1: i32) -> (i32, i32) {
    %c1_i32 = arith.constant 1 : i32
    %0 = arith.muli %arg0, %c1_i32 : i32
    %1 = arith.addi %0, %arg1 : i32
    %c0_i32 = arith.constant 0 : i32
    %2 = arith.minsi %1, %c0_i32 : i32
    %c0_i32_0 = arith.constant 0 : i32
    %c0_i32_1 = arith.constant 0 : i32
    return %2, %c0_i32_0 : i32, i32
  }
  func.func @transform_3(%arg0: i32, %arg1: i32) -> (i32, i32) {
    %c1_i32 = arith.constant 1 : i32
    %0 = arith.muli %arg0, %c1_i32 : i32
    %1 = arith.addi %0, %arg1 : i32
    %c0_i32 = arith.constant 0 : i32
    %2 = arith.minsi %1, %c0_i32 : i32
    %c0_i32_0 = arith.constant 0 : i32
    %c0_i32_1 = arith.constant 0 : i32
    return %2, %c0_i32_0 : i32, i32
  }
  func.func @transform_4(%arg0: i32, %arg1: i32) -> (i32, i32) {
    %c0_i32 = arith.constant 0 : i32
    %c0_i32_0 = arith.constant 0 : i32
    return %arg0, %c0_i32 : i32, i32
  }
}

</mosaic_0001>

<llo_original>
// kernel: tpu_custom_call.1
$region0: #{tpu_custom_call.1}
  #allocation0 [shape = 'u32[]', space=smem, size = 0x4, offset = 0x4, fixed_abs, tag = 'smem constant byte address 0x4 - core index']
  #allocation1 [shape = 'u32[144,128]{1,0:T(1,128)}', space=vmem, size = 0x12000, scoped, tag = 'internal scratch']
  #allocation2 [shape = 'f32[8,128]{1,0:T(8,128)}', space=vmem, size = 0x1000, scoped, tag = 'scratch operand']
  %s0 = inlined_call_operand.hbm [shape: f32[8,128], index: 0, kind: input, shape index: {}]
  %s1 = inlined_call_operand.vmem [shape: f32[1,128], index: 1, kind: input, shape index: {}]
  %s2 = inlined_call_operand.hbm [shape: f32[8,128], index: 2, kind: input, shape index: {}]
  %s3 = inlined_call_operand.vmem [shape: s32[8,8], index: 3, kind: input, shape index: {}]
  %s4 = inlined_call_operand.hbm [shape: f32[8,128], index: 4, kind: output, shape index: {}]
  %s5 = sld [smem:[#allocation0]]
  $region50: #{tpu_custom_call.1} parent=0
    _
  %s7 = ssub.s32 1, %s5
  %s8 = scalar_select 0, %s7, %s5
  $region1: #{tpu_custom_call.1} parent=0
    #allocation3 [shape = 'u8[4096]{0}', space=vmem, size = 0x1000, scoped, tag = 'input window, operand 0, single buffered']
    #allocation4 [shape = 's32[1]{0}', space=sflag, size = 0x4, scoped, tag = 'scoped memory for tpu_custom_call.1']
    #allocation5 [shape = 's32[1]{0}', space=sflag, size = 0x4, scoped, tag = 'scoped memory for tpu_custom_call.1']
    #allocation6 [shape = 'u8[4096]{0}', space=vmem, size = 0x1000, scoped, tag = 'input window, operand 2, single buffered']
    #allocation7 [shape = 's32[1]{0}', space=sflag, size = 0x4, scoped, tag = 'scoped memory for tpu_custom_call.1']
    #allocation8 [shape = 'u8[4096]{0}', space=vmem, size = 0x1000, scoped, tag = 'output window, operand 0, single buffered']
    %9 = vsyncpa [#allocation4], 0
    %10 = vsyncpa [#allocation7], 0
    %11 = vsyncpa [#allocation5], 0
    // Predicated region
    $region2: #{tpu_custom_call.1} parent=1 // pred_check
      _
    $region3: #{tpu_custom_call.1} parent=1 // pred_check_branch
      %13 = sbr.rel (0) target = $region5
    $region4: #{tpu_custom_call.1} parent=1 // pred_region
      %s15 = ssub.s32 128, 128
      %16 = vsyncadd [#allocation4], %s15
      %s18 = sshll.u32 [#allocation3], 4
      %s19 = int_to_ptr.vmem [resolvable:$true] %s18
      %21 = dma.hbm_to_vmem [thread:$0]  %s0, 128, %s19, [#allocation4]
    $region5: #{tpu_custom_call.1} parent=1 // pred_fallthru
      _
    // Predicated region
    $region6: #{tpu_custom_call.1} parent=1 // pred_check
      _
    $region7: #{tpu_custom_call.1} parent=1 // pred_check_branch
      %23 = sbr.rel (0) target = $region9
    $region8: #{tpu_custom_call.1} parent=1 // pred_region
      _
    $region9: #{tpu_custom_call.1} parent=1 // pred_fallthru
      _
    // Predicated region
    $region10: #{tpu_custom_call.1} parent=1 // pred_check
      _
    $region11: #{tpu_custom_call.1} parent=1 // pred_check_branch
      %25 = sbr.rel (0) target = $region13
    $region12: #{tpu_custom_call.1} parent=1 // pred_region
      %s26 = sadd.s32 0, 0
      %p27 = scmp.lt.s32.totalorder %s26, 0
      %s28 = scalar_select %p27, %s26, 0
      %s30 = ssub.s32 128, 128
      %31 = vsyncadd [#allocation7], %s30
      %s32 = smul.addr %s28, 128
      %s33 = scalar_lea.hbm %s2, %s32
      %s35 = sshll.u32 [#allocation6], 4
      %s36 = int_to_ptr.vmem [resolvable:$true] %s35
      %38 = dma.hbm_to_vmem [thread:$0]  %s33, 128, %s36, [#allocation7]
    $region13: #{tpu_custom_call.1} parent=1 // pred_fallthru
      _
    // Predicated region
    $region14: #{tpu_custom_call.1} parent=1 // pred_check
      _
    $region15: #{tpu_custom_call.1} parent=1 // pred_check_branch
      %40 = sbr.rel (0) target = $region17
    $region16: #{tpu_custom_call.1} parent=1 // pred_region
      %s41 = sadd.s32 0, 0
      %p42 = scmp.lt.s32.totalorder %s41, 0
      %s43 = scalar_select %p42, %s41, 0
      %p44 = scmp.lt.s32.totalorder %s43, 0
      %s45 = scalar_select %p44, %s43, 0
      %s46 = smul.addr %s45, 8
      %s47 = scalar_lea.vmem %s3, %s46
      %s48 = sadd.s32 0, 0
      %p49 = scmp.lt.s32.totalorder %s48, 0
      %s50 = scalar_select %p49, %s48, 0
    $region17: #{tpu_custom_call.1} parent=1 // pred_fallthru
      _
    // Predicated region
    $region18: #{tpu_custom_call.1} parent=1 // pred_check
      _
    $region19: #{tpu_custom_call.1} parent=1 // pred_check_branch
      %52 = sbr.rel (0) target = $region21
    $region20: #{tpu_custom_call.1} parent=1 // pred_region
      %53 = dma.done [#allocation4], 128
    $region21: #{tpu_custom_call.1} parent=1 // pred_fallthru
      _
    // Predicated region
    $region22: #{tpu_custom_call.1} parent=1 // pred_check
      _
    $region23: #{tpu_custom_call.1} parent=1 // pred_check_branch
      %55 = sbr.rel (0) target = $region25
    $region24: #{tpu_custom_call.1} parent=1 // pred_region
      %56 = dma.done [#allocation7], 128
    $region25: #{tpu_custom_call.1} parent=1 // pred_fallthru
      _
    %s57 = sadd.s32 0, 0
    %p58 = scmp.lt.s32.totalorder %s57, 0
    %s59 = scalar_select %p58, %s57, 0
    %p60 = scmp.lt.s32.totalorder %s59, 0
    %s61 = scalar_select %p60, %s59, 0
    %s62 = smul.addr %s61, 8
    %s63 = scalar_lea.vmem %s3, %s62
    %s64 = sadd.s32 0, 0
    %p65 = scmp.lt.s32.totalorder %s64, 0
    %s66 = scalar_select %p65, %s64, 0
    %s67 = sadd.s32 0, 0
    %p68 = scmp.lt.s32.totalorder %s67, 0
    %s69 = scalar_select %p68, %s67, 0
    %p70 = scmp.lt.s32.totalorder %s69, 0
    %s71 = scalar_select %p70, %s69, 0
    %s72 = smul.addr %s71, 8
    %s73 = scalar_lea.vmem %s3, %s72
    %s74 = sadd.s32 0, 0
    %p75 = scmp.lt.s32.totalorder %s74, 0
    %s76 = scalar_select %p75, %s74, 0
    %p78 = scmp.eq.s32.totalorder 0, 0
    // Predicated region
    $region26: #{tpu_custom_call.1} parent=1 // pred_check
      %p79 = pneg %p78
    $region27: #{tpu_custom_call.1} parent=1 // pred_check_branch
      %81 = sbr.rel (%p79) target = $region29
    $region28: #{tpu_custom_call.1} parent=1 // pred_region
      %82 = vst [vmem:[#allocation2] sm:$0xff] 0.0
    $region29: #{tpu_custom_call.1} parent=1 // pred_fallthru
      _
    %v83 = vld [vmem:[%s1] sm:$0x1]
    %v84 = vld [vmem:[#allocation3] sm:$0xff]
    %v85 = vpack.c.bf16 %v84, %v84
    %s86 = sadd.s32 0, 0
    %s87 = sadd.s32 %s86, 1
    %s88 = smul.u32 %s87, 8
    %p89 = scmp.gt.s32.totalorder %s88, 8
    %p90 = scmp.le.s32.totalorder %s88, 8
    // Predicated region
    $region30: #{tpu_custom_call.1} parent=1 // pred_check
      %p91 = pneg %p90
    $region31: #{tpu_custom_call.1} parent=1 // pred_check_branch
      %93 = sbr.rel (%p91) target = $region33
    $region32: #{tpu_custom_call.1} parent=1 // pred_region
      %v94 = vld [vmem:[#allocation6] sm:$0xff]
      %v95 = vld [vmem:[%s73] sm:$0xff]
      %v96 = vcvt.s32.f32 %v95
      %v97 = vpack.c.bf16 %v96, %v96
      %vm98 = vcmask 64512
      %v100 = vsel %vm98, %v97, 0
      %vm102 = vcmask 1043456
      %v104 = vsel %vm102, %v85, 0
      %106 = vmatprep.subr.bf16.mxu0 0
      %107 = vmatpush1.bf16.msra.mxu0 %v104
      %108 = vmatprep.subr.bf16.mxu0 0
      %109 = vmatpush1.bf16.msra.mxu0 0
      %110 = vmatprep.subr.bf16.mxu0 0
      %111 = vmatpush1.bf16.msra.mxu0 0
      %112 = vmatprep.subr.bf16.mxu0 0
      %113 = vmatpush1.bf16.msra.mxu0 0
      %114 = vmatprep.subr.bf16.mxu0 0
      %115 = vmatpush1.bf16.msra.mxu0 0
      %116 = vmatprep.subr.bf16.mxu0 0
      %117 = vmatpush1.bf16.msra.mxu0 0
      %118 = vmatprep.subr.bf16.mxu0 0
      %119 = vmatpush1.bf16.msra.mxu0 0
      %120 = vmatprep.subr.bf16.mxu0 0
      %121 = vmatpush1.bf16.msra.mxu0 0
      %122 = vmatprep.subr.bf16.mxu0 0
      %123 = vmatpush1.bf16.msra.mxu0 0
      %124 = vmatprep.subr.bf16.mxu0 0
      %125 = vmatpush1.bf16.msra.mxu0 0
      %126 = vmatprep.subr.bf16.mxu0 0
      %127 = vmatpush1.bf16.msra.mxu0 0
      %128 = vmatprep.subr.bf16.mxu0 0
      %129 = vmatpush1.bf16.msra.mxu0 0
      %130 = vmatprep.subr.bf16.mxu0 0
      %131 = vmatpush1.bf16.msra.mxu0 0
      %132 = vmatprep.subr.bf16.mxu0 0
      %133 = vmatpush1.bf16.msra.mxu0 0
      %134 = vmatprep.subr.bf16.mxu0 0
      %135 = vmatpush1.bf16.msra.mxu0 0
      %136 = vmatprep.subr.bf16.mxu0 0
      %137 = vmatpush1.bf16.msra.mxu0 0
      %138 = vmatprep.mubr.bf16.mxu0 0
      %139 = vmatmul.mubr.bf16.gmra.mrb[0].mxu0 %v100
      %v140 = vpop.f32.mrb[0].mxu0
      %v141 = vadd.f32 0.0, %v140
      %v142 = vpop.f32.mrb[0].mxu0
      %v143 = vpop.f32.mrb[0].mxu0
      %v144 = vpop.f32.mrb[0].mxu0
      %145 = vdwg.mxu0
      %v146 = vand.u32 2147483647, %v94
      %v147 = vsub.f32 0.0, %v146
      %v148 = vmul.f32 %v147, 1.442695
      %v149 = vpow.pop %v148
      %v150 = vmax.f32 %v94, 0.0
      %v151 = vadd.f32 %v149, 1.0
      %v152 = vlog2.pop %v151
      %v153 = vmul.f32 %v152, 0.6931472
      %v154 = vmul.f32 -0.5, %v149
      %v155 = vadd.f32 %v154, 1.0
      %v156 = vmul.f32 %v155, %v149
      %v157 = vand.u32 2147483647, %v149
      %vm158 = vcmp.lt.f32.partialorder %v157, 0.0004427343
      %v159 = vsel %vm158, %v156, %v153
      %v160 = vadd.f32 %v150, %v159
      %v161 = vsub.f32 %v160, %v94
      %v162 = vadd.f32 %v149, 1.0
      %v163 = vrcp.pop %v162
      %v164 = vmul.f32 %v162, %v163
      %v165 = vsub.f32 2.0, %v164
      %v166 = vmul.f32 %v163, %v165
      %vm167 = vcmp.gt.f32.partialorder %v94, 0.0
      %v168 = vsel %vm167, %v149, 1.0
      %v169 = vmul.f32 %v168, %v166
      %v170 = vsub.f32 1.0, %v169
      %v171 = vmul.f32 %v169, %v169
      %v172 = vmul.f32 %v170, %v170
      %v173 = vsub.f32 0.0, %v171
      %v174 = vmul.f32 %v173, %v161
      %v175 = vsub.f32 0.0, %v172
      %v176 = vmul.f32 %v175, %v160
      %v178 = vlaneseq
      %v179 = vshrl.u32 %v178, 7
      %v180 = vsub.s32 0, %v179
      %v181 = vrot.slane %v83, %v180
      %vm183 = vcmp.eq.f32.partialorder %v141, %v181
      %v184 = vsel %vm183, -0.25, 0.0
      %vm185 = vcmp.ne.f32.partialorder %v141, %v181
      %vm186 = vcmp.ge.f32.partialorder %v141, 0.0
      %vm187 = vmand %vm185, %vm186
      %v188 = vsel %vm187, -0.75, 0.0
      %v189 = vmul.f32 %v184, %v174
      %v190 = vmul.f32 %v188, %v176
      %v191 = vadd.f32 %v189, %v190
      %v192 = vld [vmem:[#allocation2] sm:$0xff]
      %v193 = vadd.f32 %v191, 0.0
      %v194 = vadd.f32 %v192, %v193
      %195 = vst [vmem:[#allocation2] sm:$0xff] %v194
    $region33: #{tpu_custom_call.1} parent=1 // pred_fallthru
      _
    // Predicated region
    $region34: #{tpu_custom_call.1} parent=1 // pred_check
      %p196 = pneg %p89
    $region35: #{tpu_custom_call.1} parent=1 // pred_check_branch
      %198 = sbr.rel (%p196) target = $region37
    $region36: #{tpu_custom_call.1} parent=1 // pred_region
      %v199 = vld [vmem:[#allocation6] sm:$0xff]
      %v200 = vld [vmem:[%s73] sm:$0xff]
      %v201 = vcvt.s32.f32 %v200
      %v202 = vpack.c.bf16 %v201, %v201
      %vm203 = vcmask 64512
      %v205 = vsel %vm203, %v202, 0
      %vm207 = vcmask 1043456
      %v209 = vsel %vm207, %v85, 0
      %211 = vmatprep.subr.bf16.mxu0 0
      %212 = vmatpush1.bf16.msra.mxu0 %v209
      %213 = vmatprep.subr.bf16.mxu0 0
      %214 = vmatpush1.bf16.msra.mxu0 0
      %215 = vmatprep.subr.bf16.mxu0 0
      %216 = vmatpush1.bf16.msra.mxu0 0
      %217 = vmatprep.subr.bf16.mxu0 0
      %218 = vmatpush1.bf16.msra.mxu0 0
      %219 = vmatprep.subr.bf16.mxu0 0
      %220 = vmatpush1.bf16.msra.mxu0 0
      %221 = vmatprep.subr.bf16.mxu0 0
      %222 = vmatpush1.bf16.msra.mxu0 0
      %223 = vmatprep.subr.bf16.mxu0 0
      %224 = vmatpush1.bf16.msra.mxu0 0
      %225 = vmatprep.subr.bf16.mxu0 0
      %226 = vmatpush1.bf16.msra.mxu0 0
      %227 = vmatprep.subr.bf16.mxu0 0
      %228 = vmatpush1.bf16.msra.mxu0 0
      %229 = vmatprep.subr.bf16.mxu0 0
      %230 = vmatpush1.bf16.msra.mxu0 0
      %231 = vmatprep.subr.bf16.mxu0 0
      %232 = vmatpush1.bf16.msra.mxu0 0
      %233 = vmatprep.subr.bf16.mxu0 0
      %234 = vmatpush1.bf16.msra.mxu0 0
      %235 = vmatprep.subr.bf16.mxu0 0
      %236 = vmatpush1.bf16.msra.mxu0 0
      %237 = vmatprep.subr.bf16.mxu0 0
      %238 = vmatpush1.bf16.msra.mxu0 0
      %239 = vmatprep.subr.bf16.mxu0 0
      %240 = vmatpush1.bf16.msra.mxu0 0
      %241 = vmatprep.subr.bf16.mxu0 0
      %242 = vmatpush1.bf16.msra.mxu0 0
      %243 = vmatprep.mubr.bf16.mxu0 0
      %244 = vmatmul.mubr.bf16.gmra.mrb[0].mxu0 %v205
      %v245 = vpop.f32.mrb[0].mxu0
      %v246 = vadd.f32 0.0, %v245
      %v247 = vpop.f32.mrb[0].mxu0
      %v248 = vpop.f32.mrb[0].mxu0
      %v249 = vpop.f32.mrb[0].mxu0
      %250 = vdwg.mxu0
      %v251 = vand.u32 2147483647, %v199
      %v252 = vsub.f32 0.0, %v251
      %v253 = vmul.f32 %v252, 1.442695
      %v254 = vpow.pop %v253
      %v255 = vmax.f32 %v199, 0.0
      %v256 = vadd.f32 %v254, 1.0
      %v257 = vlog2.pop %v256
      %v258 = vmul.f32 %v257, 0.6931472
      %v259 = vmul.f32 -0.5, %v254
      %v260 = vadd.f32 %v259, 1.0
      %v261 = vmul.f32 %v260, %v254
      %v262 = vand.u32 2147483647, %v254
      %vm263 = vcmp.lt.f32.partialorder %v262, 0.0004427343
      %v264 = vsel %vm263, %v261, %v258
      %v265 = vadd.f32 %v255, %v264
      %v266 = vsub.f32 %v265, %v199
      %v267 = vadd.f32 %v254, 1.0
      %v268 = vrcp.pop %v267
      %v269 = vmul.f32 %v267, %v268
      %v270 = vsub.f32 2.0, %v269
      %v271 = vmul.f32 %v268, %v270
      %vm272 = vcmp.gt.f32.partialorder %v199, 0.0
      %v273 = vsel %vm272, %v254, 1.0
      %v274 = vmul.f32 %v273, %v271
      %v275 = vsub.f32 1.0, %v274
      %v276 = vmul.f32 %v274, %v274
      %v277 = vmul.f32 %v275, %v275
      %v278 = vsub.f32 0.0, %v276
      %v279 = vmul.f32 %v278, %v266
      %v280 = vsub.f32 0.0, %v277
      %v281 = vmul.f32 %v280, %v265
      %v283 = vlaneseq
      %v284 = vshrl.u32 %v283, 7
      %v285 = vsub.s32 0, %v284
      %v286 = vrot.slane %v83, %v285
      %vm288 = vcmp.eq.f32.partialorder %v246, %v286
      %v289 = vsel %vm288, -0.25, 0.0
      %vm290 = vcmp.ne.f32.partialorder %v246, %v286
      %vm291 = vcmp.ge.f32.partialorder %v246, 0.0
      %vm292 = vmand %vm290, %vm291
      %v293 = vsel %vm292, -0.75, 0.0
      %v294 = vmul.f32 %v289, %v279
      %v295 = vmul.f32 %v293, %v281
      %v296 = vadd.f32 %v294, %v295
      %v297 = vlaneseq
      %v298 = vshrl.u32 %v297, 7
      %s299 = smul.u32 %s86, 8
      %v300 = vstv %s299
      %v301 = vadd.s32 %v298, %v300
      %vm302 = vcmp.lt.s32.totalorder %v301, 8
      %v303 = vsel %vm302, %v296, 0.0
      %v304 = vld [vmem:[#allocation2] sm:$0xff]
      %v305 = vadd.f32 %v303, 0.0
      %v306 = vadd.f32 %v304, %v305
      %307 = vst [vmem:[#allocation2] sm:$0xff] %v306
    $region37: #{tpu_custom_call.1} parent=1 // pred_fallthru
      _
    // Predicated region
    $region38: #{tpu_custom_call.1} parent=1 // pred_check
      %p308 = pneg %p78
    $region39: #{tpu_custom_call.1} parent=1 // pred_check_branch
      %310 = sbr.rel (%p308) target = $region41
    $region40: #{tpu_custom_call.1} parent=1 // pred_region
      %v311 = vld [vmem:[#allocation2] sm:$0xff]
      %312 = vst [vmem:[#allocation8] sm:$0xff] %v311
    $region41: #{tpu_custom_call.1} parent=1 // pred_fallthru
      _
    // Predicated region
    $region42: #{tpu_custom_call.1} parent=1 // pred_check
      _
    $region43: #{tpu_custom_call.1} parent=1 // pred_check_branch
      %314 = sbr.rel (0) target = $region45
    $region44: #{tpu_custom_call.1} parent=1 // pred_region
      %s316 = ssub.s32 128, 128
      %317 = vsyncadd [#allocation5], %s316
      %s319 = sshll.u32 [#allocation8], 4
      %s320 = int_to_ptr.vmem [resolvable:$true] %s319
      %322 = dma.vmem_to_hbm [thread:$0]  %s320, 128, %s4, [#allocation5]
    $region45: #{tpu_custom_call.1} parent=1 // pred_fallthru
      _
    // Predicated region
    $region46: #{tpu_custom_call.1} parent=1 // pred_check
      _
    $region47: #{tpu_custom_call.1} parent=1 // pred_check_branch
      %324 = sbr.rel (0) target = $region49
    $region48: #{tpu_custom_call.1} parent=1 // pred_region
      %325 = dma.done [#allocation5], 128
    $region49: #{tpu_custom_call.1} parent=1 // pred_fallthru
      _
    %326 = vsyncpa [#allocation4], 1
    %327 = vsyncpa [#allocation7], 1
    %328 = vsyncpa [#allocation5], 1

</llo_original>
